<compile_context>
chip_gen: v5e
topology: v5e:2x2
jax: 0.10.0
libtpu: 0.0.40
codegen_flags: <defaults>
</compile_context>

<pallas_src>
import math

import numpy as np
import jax
import jax.numpy as jnp
from jax import lax
from jax.experimental import pallas as pl


# ----------------------------- config ---------------------------------------
class Cfg:
    batch_size = 2
    seq_len = 16
    pred_len = 8
    enc_in = 4            # N (variates)
    d_model = 32
    patch_len = 4
    e_layers = 2
    n_heads = 4            # unused by the reference GCN blocks below
    d_ff = 64              # unused by the reference GCN blocks below
    k = 2                  # top-k neighbors in the adjacency
    dropout = 0.1          # inference mode -> identity
    activation = "relu"
    use_norm = True
    output_attention = False


EPS = 1e-5
NEG = -1e9


# --------------------------- in-kernel helpers -------------------------------
def _topk_softmax(s, k):
    """Row-wise: keep entries >= k-th largest (ties kept), others -> -1e9, softmax.

    O(k): repeated row-max + mask-out, instead of O(ncols) counting."""
    work = s
    kth = jnp.max(work, axis=-1, keepdims=True)
    for _ in range(k - 1):
        work = jnp.where(work >= kth, jnp.float32(-jnp.inf), work)
        kth = jnp.max(work, axis=-1, keepdims=True)
    masked = jnp.where(s >= kth, s, jnp.float32(NEG))
    masked = masked - jnp.max(masked, axis=-1, keepdims=True)
    e = jnp.exp(masked)
    # EUP reciprocal instead of a VPU divide
    return e * pl.reciprocal(jnp.sum(e, axis=-1, keepdims=True), approx=True)


def _gram(x):
    # x @ x.T without an explicit transpose (contract last dims of both operands)
    return lax.dot_general(x, x, (((1,), (1,)), ((), ())),
                           preferred_element_type=jnp.float32)


# ------------------------------ host glue ------------------------------------
def sinusoidal_pe(length, d):
    pos = np.arange(length, dtype=np.float32)[:, None]
    div = np.exp(np.arange(0, d, 2, dtype=np.float32) * (-math.log(10000.0) / d))
    pe = np.zeros((length, d), np.float32)
    pe[:, 0::2] = np.sin(pos * div)
    pe[:, 1::2] = np.cos(pos * div)
    return pe


def init_params(cfg, key):
    dm = cfg.d_model
    dm2 = dm // 2
    P = (cfg.seq_len - cfg.patch_len) // cfg.patch_len + 1
    keys = jax.random.split(key, 32)
    ki = iter(range(32))

    def w(shape, scale=0.05):
        return scale * jax.random.normal(keys[next(ki)], shape, jnp.float32)

    return {
        "emb_patch_w": w((cfg.patch_len, dm2)),
        "emb_patch_b": w((dm2,)),
        "seq_pred_w": w((P * dm2, dm)),
        "seq_pred_b": w((dm,)),
        "value_emb_w": w((cfg.seq_len, dm)),
        "value_emb_b": w((dm,)),
        "fc_w": w((dm, cfg.pred_len)),
        "fc_b": w((cfg.pred_len,)),
        "fc2_w": w((dm, cfg.pred_len)),
        "fc2_b": w((cfg.pred_len,)),
        "fc3_w": w((2 * cfg.pred_len, cfg.pred_len)),
        "fc3_b": w((cfg.pred_len,)),
        "revin_w": jnp.ones((cfg.enc_in,), jnp.float32),
        "revin_b": jnp.zeros((cfg.enc_in,), jnp.float32),
        "gcn_time": [(w((dm2, dm2)), w((dm2,))) for _ in range(cfg.e_layers)],
        "gcn_var": [(w((dm, dm)), w((dm,))) for _ in range(cfg.e_layers)],
    }


def build_forward(cfg, params):
    B, N, L = cfg.batch_size, cfg.enc_in, cfg.seq_len
    PLEN = cfg.patch_len
    P = (cfg.seq_len - cfg.patch_len) // cfg.patch_len + 1
    D2 = cfg.d_model // 2
    DM = cfg.d_model
    PRED = cfg.pred_len
    K = cfg.k
    E = cfg.e_layers
    BN, BP = B * N, B * P
    NPD = N * P * D2
    USE_NORM = cfg.use_norm
    f32 = np.float32

    def npy(a):
        return np.asarray(a, np.float32)

    # ------------------- one-time host-side preparation ----------------------
    # patch embedding folded into ONE block matmul + fused bias/PE row
    emb_w = npy(params["emb_patch_w"])                               # (PLEN, D2)
    w_embed_blk = np.kron(np.eye(P, dtype=f32), emb_w)               # (P*PLEN, P*D2)
    pe = sinusoidal_pe(P, D2)                                        # (P, D2)
    bias_pe = (np.tile(npy(params["emb_patch_b"])[None, :], (P, 1)) + pe
               ).reshape(1, P * D2)                                  # (1, P*D2)

    # in-register relayout constants: (b,n)x(p,d) <-> (b,p)x(n,d)
    n_of_rowBN = np.arange(BN) % N
    b_of_rowBN = np.arange(BN) // N
    p_of_rowBP = np.arange(BP) % P
    b_of_rowBP = np.arange(BP) // P
    col = np.arange(NPD)
    # forward wide columns ordered (rep=n, p, d)
    n_of_col_f = col // (P * D2)
    p_of_col_f = (col % (P * D2)) // D2
    m_own_n = (n_of_col_f[None, :] == n_of_rowBN[:, None]).astype(f32)   # (BN, NPD)
    m_own_p = (p_of_col_f[None, :] == p_of_rowBP[:, None]).astype(f32)   # (BP, NPD)
    rowb_f = (b_of_rowBP[:, None] == b_of_rowBN[None, :]).astype(f32)    # (BP, BN)
    ctr_f = np.kron(np.eye(N, dtype=f32),
                    np.tile(np.eye(D2, dtype=f32), (P, 1)))              # (NPD, N*D2)
    # reverse wide columns ordered (rep=p, n, d)
    p_of_col_r = col // (N * D2)
    n_of_col_r = (col % (N * D2)) // D2
    mr_own_p = (p_of_col_r[None, :] == p_of_rowBP[:, None]).astype(f32)  # (BP, NPD)
    mr_own_n = (n_of_col_r[None, :] == n_of_rowBN[:, None]).astype(f32)  # (BN, NPD)
    rowb_r = (b_of_rowBN[:, None] == b_of_rowBP[None, :]).astype(f32)    # (BN, BP)
    ctr_r = np.kron(np.eye(P, dtype=f32),
                    np.tile(np.eye(D2, dtype=f32), (N, 1)))              # (NPD, P*D2)

    # time-GCN weights as block-diagonal kron(I_N, W); variate-GCN as-is
    gt_w = np.concatenate([np.kron(np.eye(N, dtype=f32), npy(w_l))
                           for (w_l, _) in params["gcn_time"]], axis=0)  # (E*N*D2, N*D2)
    gt_b = np.stack([np.tile(npy(b_l), N) for (_, b_l) in params["gcn_time"]])  # (E, N*D2)
    gv_w = np.concatenate([npy(w_l) for (w_l, _) in params["gcn_var"]], axis=0)  # (E*DM, DM)
    gv_b = np.stack([npy(b_l) for (_, b_l) in params["gcn_var"]])        # (E, DM)

    # back-relayout contraction folded into seq_pred weight (exact algebra)
    sw_fold = ctr_r @ npy(params["seq_pred_w"])                          # (NPD, DM)
    sb = npy(params["seq_pred_b"])[None, :]                              # (1, DM)
    vw = npy(params["value_emb_w"])                                      # (L, DM)
    vb = npy(params["value_emb_b"])[None, :]                             # (1, DM)

    # fold FC / FC2 / concat / FC3 into ONE matmul + one bias
    fc3_top = npy(params["fc3_w"])[:PRED, :]
    fc3_bot = npy(params["fc3_w"])[PRED:, :]
    head_w = np.concatenate([npy(params["fc_w"]) @ fc3_top,
                             npy(params["fc2_w"]) @ fc3_bot], axis=0)    # (2*DM, PRED)
    head_b = (npy(params["fc_b"]) @ fc3_top + npy(params["fc2_b"]) @ fc3_bot
              + npy(params["fc3_b"]))[None, :]                           # (1, PRED)

    # cross-batch masks so one big similarity matmul covers all batches
    mask_t = np.where(b_of_rowBP[:, None] == b_of_rowBP[None, :], 0.0, NEG).astype(f32)
    mask_v = np.where(b_of_rowBN[:, None] == b_of_rowBN[None, :], 0.0, NEG).astype(f32)
    revin = np.zeros((BN, 2), f32)
    revin[:, 0] = np.tile(npy(params["revin_w"]), B)
    revin[:, 1] = np.tile(npy(params["revin_b"]), B)

    # -------- pack constants by lane width: 4 DMAs instead of ~20 ------------
    def pack(entries, align=8):
        width = max(a.shape[1] for a in entries)
        offs, chunks, rows = [], [], 0
        for a in entries:
            offs.append(rows)
            if a.shape[1] < width:
                a = np.concatenate(
                    [a, np.zeros((a.shape[0], width - a.shape[1]), f32)], axis=1)
            pad = (-a.shape[0]) % align
            if pad:
                a = np.concatenate([a, np.zeros((pad, width), f32)], axis=0)
            chunks.append(a)
            rows += a.shape[0]
        return jnp.asarray(np.concatenate(chunks, axis=0)), offs

    pWIDE, (o_mn, o_mp, o_rp, o_rn) = pack([m_own_n, m_own_p, mr_own_p, mr_own_n])
    pG, (o_emb, o_bpe, o_ctrf, o_gtw, o_gtb) = pack(
        [w_embed_blk, bias_pe, ctr_f, gt_w, gt_b])
    pV, (o_swf, o_sb, o_vw, o_vb, o_gvw, o_gvb) = pack(
        [sw_fold, sb, vw, vb, gv_w, gv_b])
    pS, (o_rbf, o_rbr, o_mt, o_mv, o_hw, o_hb, o_rev) = pack(
        [rowb_f, rowb_r, mask_t, mask_v, head_w, head_b, revin])

    # ----------------------------- fused kernel ------------------------------
    def kernel(x_ref, pw_ref, pg_ref, pv_ref, ps_ref, out_ref):
        F = jnp.float32
        x = x_ref[...]                                    # (B*N, L) rows=(b, variate)

        # ---- RevIN 'norm' ----
        if USE_NORM:
            rw = ps_ref[o_rev:o_rev + BN, 0:1]
            rb = ps_ref[o_rev:o_rev + BN, 1:2]
            mu = jnp.mean(x, axis=-1, keepdims=True)
            xc = x - mu
            var = jnp.mean(xc * xc, axis=-1, keepdims=True)
            istd = lax.rsqrt(var + EPS)                   # EUP
            xn = xc * istd * rw + rb
        else:
            xn = x

        # ---- patch + positional embedding: ONE block matmul ----
        emb = (jnp.dot(xn[:, 0:P * PLEN], pg_ref[o_emb:o_emb + P * PLEN, 0:P * D2],
                       preferred_element_type=F)
               + pg_ref[o_bpe:o_bpe + 1, 0:P * D2])       # (BN, P*D2) rows=(b,n)

        # ---- relayout (b,n)x(p,d) -> (b,p)x(n,d): in-register, 2 matmuls ----
        wide = jnp.concatenate([emb] * N, axis=1) * pw_ref[o_mn:o_mn + BN, :]
        z = jnp.dot(ps_ref[o_rbf:o_rbf + BP, 0:BN], wide,
                    preferred_element_type=F)             # (BP, NPD)
        g = jnp.dot(z * pw_ref[o_mp:o_mp + BP, :],
                    pg_ref[o_ctrf:o_ctrf + NPD, 0:N * D2],
                    preferred_element_type=F)             # (BP, N*D2) rows=(b,p)

        # ---- adjacency over patches (mean over variates, cross-batch masked) ----
        m = g[:, 0:D2]
        for n in range(1, N):
            m = m + g[:, n * D2:(n + 1) * D2]
        m = m * (1.0 / N)                                 # (BP, D2)
        a_t = _topk_softmax(_gram(m) + ps_ref[o_mt:o_mt + BP, 0:BP], K)

        # ---- time-graph GCN: 2 wide matmuls per layer, batch folded ----
        for l in range(E):
            ag = jnp.dot(a_t, g, preferred_element_type=F)
            g = jnp.maximum(
                jnp.dot(ag,
                        pg_ref[o_gtw + l * N * D2:o_gtw + (l + 1) * N * D2, 0:N * D2],
                        preferred_element_type=F)
                + pg_ref[o_gtb + l:o_gtb + l + 1, 0:N * D2], 0.0)

        # ---- relayout back + seq_pred (contraction folded into sw_fold) ----
        wide_r = jnp.concatenate([g] * P, axis=1) * pw_ref[o_rp:o_rp + BP, :]
        zr = jnp.dot(ps_ref[o_rbr:o_rbr + BN, 0:BP], wide_r,
                     preferred_element_type=F)            # (BN, NPD)
        dec_t = (jnp.dot(zr * pw_ref[o_rn:o_rn + BN, :],
                         pv_ref[o_swf:o_swf + NPD, 0:DM],
                         preferred_element_type=F)
                 + pv_ref[o_sb:o_sb + 1, 0:DM])           # (BN, DM)

        # ---- variate-graph branch (fully batch-folded) ----
        hv = (jnp.dot(xn, pv_ref[o_vw:o_vw + L, 0:DM], preferred_element_type=F)
              + pv_ref[o_vb:o_vb + 1, 0:DM])              # (BN, DM)
        a_v = _topk_softmax(_gram(hv) + ps_ref[o_mv:o_mv + BN, 0:BN], K)
        for l in range(E):
            ah = jnp.dot(a_v, hv, preferred_element_type=F)
            hv = jnp.maximum(
                jnp.dot(ah, pv_ref[o_gvw + l * DM:o_gvw + (l + 1) * DM, 0:DM],
                        preferred_element_type=F)
                + pv_ref[o_gvb + l:o_gvb + l + 1, 0:DM], 0.0)

        # ---- fused head (FC / FC2 / concat / FC3 folded into one matmul) ----
        dec = (jnp.dot(jnp.concatenate([dec_t, hv], axis=-1),
                       ps_ref[o_hw:o_hw + 2 * DM, 0:PRED],
                       preferred_element_type=F)
               + ps_ref[o_hb:o_hb + 1, 0:PRED])           # (BN, PRED)

        # ---- RevIN 'denorm' ----
        if USE_NORM:
            stdev = (var + EPS) * istd                    # == sqrt(var + EPS)
            dec = (dec - rb) * pl.reciprocal(rw + EPS * EPS, approx=True)
            dec = dec * stdev + mu
        out_ref[...] = dec

    fused = pl.pallas_call(
        kernel,
        out_shape=jax.ShapeDtypeStruct((BN, PRED), jnp.float32),
    )

    def forward(x_enc):
        # (B, L, N) -> rows=(b, variate): (B*N, L).  These layout ops stay
        # inside the same jit so XLA fuses them with the operand copies.
        xr = jnp.transpose(x_enc, (0, 2, 1)).reshape(BN, L)
        out = fused(xr, pWIDE, pG, pV, pS)                # (BN, PRED)
        # (B, N, PRED) -> (B, PRED, N); the reference's [:, -pred_len:, :] is a no-op.
        return jnp.transpose(out.reshape(B, N, PRED), (0, 2, 1))

    return forward


# ------------------------------ main -----------------------------------------
if __name__ == "__main__":
    cfg = Cfg()
    key = jax.random.PRNGKey(0)
    k_x, k_p = jax.random.split(key)
    x_enc = jax.random.normal(k_x, (cfg.batch_size, cfg.seq_len, cfg.enc_in),
                              dtype=jnp.float32)
    params = init_params(cfg, k_p)

    fwd = jax.jit(build_forward(cfg, params))
    out = jax.block_until_ready(fwd(x_enc))

    assert out.shape == (cfg.batch_size, cfg.pred_len, cfg.enc_in), out.shape
    assert bool(jnp.all(jnp.isfinite(out)))
    print("KERNEL_OK")
</pallas_src>

<mosaic_0001>
module attributes {stable_mosaic.version = 11 : i64} {
  func.func @kernel(%arg0: memref<8x16xf32, #tpu.memory_space<vmem>>, %arg1: memref<32x256xf32, #tpu.memory_space<vmem>>, %arg2: memref<416x64xf32, #tpu.memory_space<vmem>>, %arg3: memref<360x32xf32, #tpu.memory_space<vmem>>, %arg4: memref<112x8xf32, #tpu.memory_space<vmem>>, %arg5: memref<8x8xf32, #tpu.memory_space<vmem>>) attributes {dimension_semantics = [], scalar_prefetch = 0 : i64, scratch_operands = 0 : i64, tpu.core_type = #tpu.core_type<tc>} {
    %c0 = arith.constant 0 : index
    %c0_0 = arith.constant 0 : index
    %0 = vector.load %arg0[%c0, %c0_0] : memref<8x16xf32, #tpu.memory_space<vmem>>, vector<8x16xf32>
    %c104 = arith.constant 104 : index
    %c0_1 = arith.constant 0 : index
    %1 = vector.load %arg4[%c104, %c0_1] : memref<112x8xf32, #tpu.memory_space<vmem>>, vector<8x1xf32>
    %c104_2 = arith.constant 104 : index
    %c1 = arith.constant 1 : index
    %2 = vector.load %arg4[%c104_2, %c1] : memref<112x8xf32, #tpu.memory_space<vmem>>, vector<8x1xf32>
    %cst = arith.constant dense<0.000000e+00> : vector<8xf32>
    %3 = vector.multi_reduction <add>, %0, %cst [1] : vector<8x16xf32> to vector<8xf32>
    %4 = vector.shape_cast %3 : vector<8xf32> to vector<8x1xf32>
    %cst_3 = arith.constant 1.600000e+01 : f32
    %5 = vector.broadcast %cst_3 : f32 to vector<8x1xf32>
    %6 = arith.divf %4, %5 : vector<8x1xf32>
    %7 = vector.broadcast %6 : vector<8x1xf32> to vector<8x16xf32>
    %8 = arith.subf %0, %7 : vector<8x16xf32>
    %9 = arith.mulf %8, %8 : vector<8x16xf32>
    %cst_4 = arith.constant dense<0.000000e+00> : vector<8xf32>
    %10 = vector.multi_reduction <add>, %9, %cst_4 [1] : vector<8x16xf32> to vector<8xf32>
    %11 = vector.shape_cast %10 : vector<8xf32> to vector<8x1xf32>
    %cst_5 = arith.constant 1.600000e+01 : f32
    %12 = vector.broadcast %cst_5 : f32 to vector<8x1xf32>
    %13 = arith.divf %11, %12 : vector<8x1xf32>
    %cst_6 = arith.constant 9.99999974E-6 : f32
    %14 = vector.broadcast %cst_6 : f32 to vector<8x1xf32>
    %15 = arith.addf %13, %14 : vector<8x1xf32>
    %16 = math.rsqrt %15 : vector<8x1xf32>
    %17 = vector.broadcast %16 : vector<8x1xf32> to vector<8x16xf32>
    %18 = arith.mulf %8, %17 : vector<8x16xf32>
    %19 = vector.broadcast %1 : vector<8x1xf32> to vector<8x16xf32>
    %20 = arith.mulf %18, %19 : vector<8x16xf32>
    %21 = vector.broadcast %2 : vector<8x1xf32> to vector<8x16xf32>
    %22 = arith.addf %20, %21 : vector<8x16xf32>
    %c0_7 = arith.constant 0 : index
    %c0_8 = arith.constant 0 : index
    %23 = vector.load %arg2[%c0_7, %c0_8] : memref<416x64xf32, #tpu.memory_space<vmem>>, vector<16x64xf32>
    %cst_9 = arith.constant dense<0.000000e+00> : vector<8x64xf32>
    %24 = tpu.matmul %22, %23, %cst_9 {dimension_numbers = #tpu.dot_dimension_numbers<[1], [0], [0], [1], [0, 0, 1, 1], [], []>} : vector<8x16xf32>, vector<16x64xf32>, vector<8x64xf32> -> vector<8x64xf32>
    %c16 = arith.constant 16 : index
    %c0_10 = arith.constant 0 : index
    %25 = vector.load %arg2[%c16, %c0_10] : memref<416x64xf32, #tpu.memory_space<vmem>>, vector<1x64xf32>
    %26 = vector.broadcast %25 : vector<1x64xf32> to vector<8x64xf32>
    %27 = arith.addf %24, %26 : vector<8x64xf32>
    %28 = tpu.concatenate %27, %27, %27, %27 in 1 : vector<8x64xf32>, vector<8x64xf32>, vector<8x64xf32>, vector<8x64xf32> -> vector<8x256xf32>
    %c0_11 = arith.constant 0 : index
    %c0_12 = arith.constant 0 : index
    %29 = vector.load %arg1[%c0_11, %c0_12] : memref<32x256xf32, #tpu.memory_space<vmem>>, vector<8x256xf32>
    %30 = arith.mulf %28, %29 : vector<8x256xf32>
    %c0_13 = arith.constant 0 : index
    %c0_14 = arith.constant 0 : index
    %31 = vector.load %arg4[%c0_13, %c0_14] : memref<112x8xf32, #tpu.memory_space<vmem>>, vector<8x8xf32>
    %cst_15 = arith.constant dense<0.000000e+00> : vector<8x256xf32>
    %32 = tpu.matmul %31, %30, %cst_15 {dimension_numbers = #tpu.dot_dimension_numbers<[1], [0], [0], [1], [0, 0, 1, 1], [], []>} : vector<8x8xf32>, vector<8x256xf32>, vector<8x256xf32> -> vector<8x256xf32>
    %c8 = arith.constant 8 : index
    %c0_16 = arith.constant 0 : index
    %33 = vector.load %arg1[%c8, %c0_16] : memref<32x256xf32, #tpu.memory_space<vmem>>, vector<8x256xf32>
    %34 = arith.mulf %32, %33 : vector<8x256xf32>
    %c24 = arith.constant 24 : index
    %c0_17 = arith.constant 0 : index
    %35 = vector.load %arg2[%c24, %c0_17] : memref<416x64xf32, #tpu.memory_space<vmem>>, vector<256x64xf32>
    %cst_18 = arith.constant dense<0.000000e+00> : vector<8x64xf32>
    %36 = tpu.matmul %34, %35, %cst_18 {dimension_numbers = #tpu.dot_dimension_numbers<[1], [0], [0], [1], [0, 0, 1, 1], [], []>} : vector<8x256xf32>, vector<256x64xf32>, vector<8x64xf32> -> vector<8x64xf32>
    %37 = vector.extract_strided_slice %36 {offsets = [0, 0], sizes = [8, 16], strides = [1, 1]} : vector<8x64xf32> to vector<8x16xf32>
    %38 = vector.extract_strided_slice %36 {offsets = [0, 16], sizes = [8, 16], strides = [1, 1]} : vector<8x64xf32> to vector<8x16xf32>
    %39 = arith.addf %37, %38 : vector<8x16xf32>
    %40 = vector.extract_strided_slice %36 {offsets = [0, 32], sizes = [8, 16], strides = [1, 1]} : vector<8x64xf32> to vector<8x16xf32>
    %41 = arith.addf %39, %40 : vector<8x16xf32>
    %42 = vector.extract_strided_slice %36 {offsets = [0, 48], sizes = [8, 16], strides = [1, 1]} : vector<8x64xf32> to vector<8x16xf32>
    %43 = arith.addf %41, %42 : vector<8x16xf32>
    %cst_19 = arith.constant 2.500000e-01 : f32
    %44 = vector.broadcast %cst_19 : f32 to vector<8x16xf32>
    %45 = arith.mulf %43, %44 : vector<8x16xf32>
    %cst_20 = arith.constant dense<0.000000e+00> : vector<8x8xf32>
    %46 = tpu.matmul %45, %45, %cst_20 {dimension_numbers = #tpu.dot_dimension_numbers<[1], [1], [0], [0], [0, 0, 1, 0], [], []>} : vector<8x16xf32>, vector<8x16xf32>, vector<8x8xf32> -> vector<8x8xf32>
    %c16_21 = arith.constant 16 : index
    %c0_22 = arith.constant 0 : index
    %47 = vector.load %arg4[%c16_21, %c0_22] : memref<112x8xf32, #tpu.memory_space<vmem>>, vector<8x8xf32>
    %48 = arith.addf %46, %47 : vector<8x8xf32>
    %cst_23 = arith.constant dense<0xFF800000> : vector<8xf32>
    %49 = vector.multi_reduction <maximumf>, %48, %cst_23 [1] : vector<8x8xf32> to vector<8xf32>
    %50 = vector.shape_cast %49 : vector<8xf32> to vector<8x1xf32>
    %51 = vector.broadcast %50 : vector<8x1xf32> to vector<8x8xf32>
    %52 = arith.cmpf oge, %48, %51 : vector<8x8xf32>
    %cst_24 = arith.constant 0xFF800000 : f32
    %53 = vector.broadcast %cst_24 : f32 to vector<8x8xf32>
    %54 = arith.select %52, %53, %48 : vector<8x8xi1>, vector<8x8xf32>
    %cst_25 = arith.constant dense<0xFF800000> : vector<8xf32>
    %55 = vector.multi_reduction <maximumf>, %54, %cst_25 [1] : vector<8x8xf32> to vector<8xf32>
    %56 = vector.shape_cast %55 : vector<8xf32> to vector<8x1xf32>
    %57 = vector.broadcast %56 : vector<8x1xf32> to vector<8x8xf32>
    %58 = arith.cmpf oge, %48, %57 : vector<8x8xf32>
    %cst_26 = arith.constant -1.000000e+09 : f32
    %59 = vector.broadcast %cst_26 : f32 to vector<8x8xf32>
    %60 = arith.select %58, %48, %59 : vector<8x8xi1>, vector<8x8xf32>
    %cst_27 = arith.constant dense<0xFF800000> : vector<8xf32>
    %61 = vector.multi_reduction <maximumf>, %60, %cst_27 [1] : vector<8x8xf32> to vector<8xf32>
    %62 = vector.shape_cast %61 : vector<8xf32> to vector<8x1xf32>
    %63 = vector.broadcast %62 : vector<8x1xf32> to vector<8x8xf32>
    %64 = arith.subf %60, %63 : vector<8x8xf32>
    %65 = math.exp %64 : vector<8x8xf32>
    %cst_28 = arith.constant dense<0.000000e+00> : vector<8xf32>
    %66 = vector.multi_reduction <add>, %65, %cst_28 [1] : vector<8x8xf32> to vector<8xf32>
    %67 = vector.shape_cast %66 : vector<8xf32> to vector<8x1xf32>
    %68 = tpu.reciprocal %67 {approx = true} : vector<8x1xf32> -> vector<8x1xf32>
    %69 = vector.broadcast %68 : vector<8x1xf32> to vector<8x8xf32>
    %70 = arith.mulf %65, %69 : vector<8x8xf32>
    %cst_29 = arith.constant dense<0.000000e+00> : vector<8x64xf32>
    %71 = tpu.matmul %70, %36, %cst_29 {dimension_numbers = #tpu.dot_dimension_numbers<[1], [0], [0], [1], [0, 0, 1, 1], [], []>} : vector<8x8xf32>, vector<8x64xf32>, vector<8x64xf32> -> vector<8x64xf32>
    %c280 = arith.constant 280 : index
    %c0_30 = arith.constant 0 : index
    %72 = vector.load %arg2[%c280, %c0_30] : memref<416x64xf32, #tpu.memory_space<vmem>>, vector<64x64xf32>
    %cst_31 = arith.constant dense<0.000000e+00> : vector<8x64xf32>
    %73 = tpu.matmul %71, %72, %cst_31 {dimension_numbers = #tpu.dot_dimension_numbers<[1], [0], [0], [1], [0, 0, 1, 1], [], []>} : vector<8x64xf32>, vector<64x64xf32>, vector<8x64xf32> -> vector<8x64xf32>
    %c408 = arith.constant 408 : index
    %c0_32 = arith.constant 0 : index
    %74 = vector.load %arg2[%c408, %c0_32] : memref<416x64xf32, #tpu.memory_space<vmem>>, vector<1x64xf32>
    %75 = vector.broadcast %74 : vector<1x64xf32> to vector<8x64xf32>
    %76 = arith.addf %73, %75 : vector<8x64xf32>
    %cst_33 = arith.constant 0.000000e+00 : f32
    %77 = vector.broadcast %cst_33 : f32 to vector<8x64xf32>
    %78 = arith.maximumf %76, %77 : vector<8x64xf32>
    %cst_34 = arith.constant dense<0.000000e+00> : vector<8x64xf32>
    %79 = tpu.matmul %70, %78, %cst_34 {dimension_numbers = #tpu.dot_dimension_numbers<[1], [0], [0], [1], [0, 0, 1, 1], [], []>} : vector<8x8xf32>, vector<8x64xf32>, vector<8x64xf32> -> vector<8x64xf32>
    %c344 = arith.constant 344 : index
    %c0_35 = arith.constant 0 : index
    %80 = vector.load %arg2[%c344, %c0_35] : memref<416x64xf32, #tpu.memory_space<vmem>>, vector<64x64xf32>
    %cst_36 = arith.constant dense<0.000000e+00> : vector<8x64xf32>
    %81 = tpu.matmul %79, %80, %cst_36 {dimension_numbers = #tpu.dot_dimension_numbers<[1], [0], [0], [1], [0, 0, 1, 1], [], []>} : vector<8x64xf32>, vector<64x64xf32>, vector<8x64xf32> -> vector<8x64xf32>
    %c409 = arith.constant 409 : index
    %c0_37 = arith.constant 0 : index
    %82 = vector.load %arg2[%c409, %c0_37] : memref<416x64xf32, #tpu.memory_space<vmem>>, vector<1x64xf32>
    %83 = vector.broadcast %82 : vector<1x64xf32> to vector<8x64xf32>
    %84 = arith.addf %81, %83 : vector<8x64xf32>
    %cst_38 = arith.constant 0.000000e+00 : f32
    %85 = vector.broadcast %cst_38 : f32 to vector<8x64xf32>
    %86 = arith.maximumf %84, %85 : vector<8x64xf32>
    %87 = tpu.concatenate %86, %86, %86, %86 in 1 : vector<8x64xf32>, vector<8x64xf32>, vector<8x64xf32>, vector<8x64xf32> -> vector<8x256xf32>
    %c16_39 = arith.constant 16 : index
    %c0_40 = arith.constant 0 : index
    %88 = vector.load %arg1[%c16_39, %c0_40] : memref<32x256xf32, #tpu.memory_space<vmem>>, vector<8x256xf32>
    %89 = arith.mulf %87, %88 : vector<8x256xf32>
    %c8_41 = arith.constant 8 : index
    %c0_42 = arith.constant 0 : index
    %90 = vector.load %arg4[%c8_41, %c0_42] : memref<112x8xf32, #tpu.memory_space<vmem>>, vector<8x8xf32>
    %cst_43 = arith.constant dense<0.000000e+00> : vector<8x256xf32>
    %91 = tpu.matmul %90, %89, %cst_43 {dimension_numbers = #tpu.dot_dimension_numbers<[1], [0], [0], [1], [0, 0, 1, 1], [], []>} : vector<8x8xf32>, vector<8x256xf32>, vector<8x256xf32> -> vector<8x256xf32>
    %c24_44 = arith.constant 24 : index
    %c0_45 = arith.constant 0 : index
    %92 = vector.load %arg1[%c24_44, %c0_45] : memref<32x256xf32, #tpu.memory_space<vmem>>, vector<8x256xf32>
    %93 = arith.mulf %91, %92 : vector<8x256xf32>
    %c0_46 = arith.constant 0 : index
    %c0_47 = arith.constant 0 : index
    %94 = vector.load %arg3[%c0_46, %c0_47] : memref<360x32xf32, #tpu.memory_space<vmem>>, vector<256x32xf32>
    %cst_48 = arith.constant dense<0.000000e+00> : vector<8x32xf32>
    %95 = tpu.matmul %93, %94, %cst_48 {dimension_numbers = #tpu.dot_dimension_numbers<[1], [0], [0], [1], [0, 0, 1, 1], [], []>} : vector<8x256xf32>, vector<256x32xf32>, vector<8x32xf32> -> vector<8x32xf32>
    %c256 = arith.constant 256 : index
    %c0_49 = arith.constant 0 : index
    %96 = vector.load %arg3[%c256, %c0_49] : memref<360x32xf32, #tpu.memory_space<vmem>>, vector<1x32xf32>
    %97 = vector.broadcast %96 : vector<1x32xf32> to vector<8x32xf32>
    %98 = arith.addf %95, %97 : vector<8x32xf32>
    %c264 = arith.constant 264 : index
    %c0_50 = arith.constant 0 : index
    %99 = vector.load %arg3[%c264, %c0_50] : memref<360x32xf32, #tpu.memory_space<vmem>>, vector<16x32xf32>
    %cst_51 = arith.constant dense<0.000000e+00> : vector<8x32xf32>
    %100 = tpu.matmul %22, %99, %cst_51 {dimension_numbers = #tpu.dot_dimension_numbers<[1], [0], [0], [1], [0, 0, 1, 1], [], []>} : vector<8x16xf32>, vector<16x32xf32>, vector<8x32xf32> -> vector<8x32xf32>
    %c280_52 = arith.constant 280 : index
    %c0_53 = arith.constant 0 : index
    %101 = vector.load %arg3[%c280_52, %c0_53] : memref<360x32xf32, #tpu.memory_space<vmem>>, vector<1x32xf32>
    %102 = vector.broadcast %101 : vector<1x32xf32> to vector<8x32xf32>
    %103 = arith.addf %100, %102 : vector<8x32xf32>
    %cst_54 = arith.constant dense<0.000000e+00> : vector<8x8xf32>
    %104 = tpu.matmul %103, %103, %cst_54 {dimension_numbers = #tpu.dot_dimension_numbers<[1], [1], [0], [0], [0, 0, 1, 0], [], []>} : vector<8x32xf32>, vector<8x32xf32>, vector<8x8xf32> -> vector<8x8xf32>
    %c24_55 = arith.constant 24 : index
    %c0_56 = arith.constant 0 : index
    %105 = vector.load %arg4[%c24_55, %c0_56] : memref<112x8xf32, #tpu.memory_space<vmem>>, vector<8x8xf32>
    %106 = arith.addf %104, %105 : vector<8x8xf32>
    %cst_57 = arith.constant dense<0xFF800000> : vector<8xf32>
    %107 = vector.multi_reduction <maximumf>, %106, %cst_57 [1] : vector<8x8xf32> to vector<8xf32>
    %108 = vector.shape_cast %107 : vector<8xf32> to vector<8x1xf32>
    %109 = vector.broadcast %108 : vector<8x1xf32> to vector<8x8xf32>
    %110 = arith.cmpf oge, %106, %109 : vector<8x8xf32>
    %cst_58 = arith.constant 0xFF800000 : f32
    %111 = vector.broadcast %cst_58 : f32 to vector<8x8xf32>
    %112 = arith.select %110, %111, %106 : vector<8x8xi1>, vector<8x8xf32>
    %cst_59 = arith.constant dense<0xFF800000> : vector<8xf32>
    %113 = vector.multi_reduction <maximumf>, %112, %cst_59 [1] : vector<8x8xf32> to vector<8xf32>
    %114 = vector.shape_cast %113 : vector<8xf32> to vector<8x1xf32>
    %115 = vector.broadcast %114 : vector<8x1xf32> to vector<8x8xf32>
    %116 = arith.cmpf oge, %106, %115 : vector<8x8xf32>
    %cst_60 = arith.constant -1.000000e+09 : f32
    %117 = vector.broadcast %cst_60 : f32 to vector<8x8xf32>
    %118 = arith.select %116, %106, %117 : vector<8x8xi1>, vector<8x8xf32>
    %cst_61 = arith.constant dense<0xFF800000> : vector<8xf32>
    %119 = vector.multi_reduction <maximumf>, %118, %cst_61 [1] : vector<8x8xf32> to vector<8xf32>
    %120 = vector.shape_cast %119 : vector<8xf32> to vector<8x1xf32>
    %121 = vector.broadcast %120 : vector<8x1xf32> to vector<8x8xf32>
    %122 = arith.subf %118, %121 : vector<8x8xf32>
    %123 = math.exp %122 : vector<8x8xf32>
    %cst_62 = arith.constant dense<0.000000e+00> : vector<8xf32>
    %124 = vector.multi_reduction <add>, %123, %cst_62 [1] : vector<8x8xf32> to vector<8xf32>
    %125 = vector.shape_cast %124 : vector<8xf32> to vector<8x1xf32>
    %126 = tpu.reciprocal %125 {approx = true} : vector<8x1xf32> -> vector<8x1xf32>
    %127 = vector.broadcast %126 : vector<8x1xf32> to vector<8x8xf32>
    %128 = arith.mulf %123, %127 : vector<8x8xf32>
    %cst_63 = arith.constant dense<0.000000e+00> : vector<8x32xf32>
    %129 = tpu.matmul %128, %103, %cst_63 {dimension_numbers = #tpu.dot_dimension_numbers<[1], [0], [0], [1], [0, 0, 1, 1], [], []>} : vector<8x8xf32>, vector<8x32xf32>, vector<8x32xf32> -> vector<8x32xf32>
    %c288 = arith.constant 288 : index
    %c0_64 = arith.constant 0 : index
    %130 = vector.load %arg3[%c288, %c0_64] : memref<360x32xf32, #tpu.memory_space<vmem>>, vector<32x32xf32>
    %cst_65 = arith.constant dense<0.000000e+00> : vector<8x32xf32>
    %131 = tpu.matmul %129, %130, %cst_65 {dimension_numbers = #tpu.dot_dimension_numbers<[1], [0], [0], [1], [0, 0, 1, 1], [], []>} : vector<8x32xf32>, vector<32x32xf32>, vector<8x32xf32> -> vector<8x32xf32>
    %c352 = arith.constant 352 : index
    %c0_66 = arith.constant 0 : index
    %132 = vector.load %arg3[%c352, %c0_66] : memref<360x32xf32, #tpu.memory_space<vmem>>, vector<1x32xf32>
    %133 = vector.broadcast %132 : vector<1x32xf32> to vector<8x32xf32>
    %134 = arith.addf %131, %133 : vector<8x32xf32>
    %cst_67 = arith.constant 0.000000e+00 : f32
    %135 = vector.broadcast %cst_67 : f32 to vector<8x32xf32>
    %136 = arith.maximumf %134, %135 : vector<8x32xf32>
    %cst_68 = arith.constant dense<0.000000e+00> : vector<8x32xf32>
    %137 = tpu.matmul %128, %136, %cst_68 {dimension_numbers = #tpu.dot_dimension_numbers<[1], [0], [0], [1], [0, 0, 1, 1], [], []>} : vector<8x8xf32>, vector<8x32xf32>, vector<8x32xf32> -> vector<8x32xf32>
    %c320 = arith.constant 320 : index
    %c0_69 = arith.constant 0 : index
    %138 = vector.load %arg3[%c320, %c0_69] : memref<360x32xf32, #tpu.memory_space<vmem>>, vector<32x32xf32>
    %cst_70 = arith.constant dense<0.000000e+00> : vector<8x32xf32>
    %139 = tpu.matmul %137, %138, %cst_70 {dimension_numbers = #tpu.dot_dimension_numbers<[1], [0], [0], [1], [0, 0, 1, 1], [], []>} : vector<8x32xf32>, vector<32x32xf32>, vector<8x32xf32> -> vector<8x32xf32>
    %c353 = arith.constant 353 : index
    %c0_71 = arith.constant 0 : index
    %140 = vector.load %arg3[%c353, %c0_71] : memref<360x32xf32, #tpu.memory_space<vmem>>, vector<1x32xf32>
    %141 = vector.broadcast %140 : vector<1x32xf32> to vector<8x32xf32>
    %142 = arith.addf %139, %141 : vector<8x32xf32>
    %cst_72 = arith.constant 0.000000e+00 : f32
    %143 = vector.broadcast %cst_72 : f32 to vector<8x32xf32>
    %144 = arith.maximumf %142, %143 : vector<8x32xf32>
    %145 = tpu.concatenate %98, %144 in 1 : vector<8x32xf32>, vector<8x32xf32> -> vector<8x64xf32>
    %c32 = arith.constant 32 : index
    %c0_73 = arith.constant 0 : index
    %146 = vector.load %arg4[%c32, %c0_73] : memref<112x8xf32, #tpu.memory_space<vmem>>, vector<64x8xf32>
    %cst_74 = arith.constant dense<0.000000e+00> : vector<8x8xf32>
    %147 = tpu.matmul %145, %146, %cst_74 {dimension_numbers = #tpu.dot_dimension_numbers<[1], [0], [0], [1], [0, 0, 1, 1], [], []>} : vector<8x64xf32>, vector<64x8xf32>, vector<8x8xf32> -> vector<8x8xf32>
    %c96 = arith.constant 96 : index
    %c0_75 = arith.constant 0 : index
    %148 = vector.load %arg4[%c96, %c0_75] : memref<112x8xf32, #tpu.memory_space<vmem>>, vector<1x8xf32>
    %149 = vector.broadcast %148 : vector<1x8xf32> to vector<8x8xf32>
    %150 = arith.addf %147, %149 : vector<8x8xf32>
    %cst_76 = arith.constant 9.99999974E-6 : f32
    %151 = vector.broadcast %cst_76 : f32 to vector<8x1xf32>
    %152 = arith.addf %13, %151 : vector<8x1xf32>
    %153 = arith.mulf %152, %16 : vector<8x1xf32>
    %154 = vector.broadcast %2 : vector<8x1xf32> to vector<8x8xf32>
    %155 = arith.subf %150, %154 : vector<8x8xf32>
    %cst_77 = arith.constant 1.000000e-10 : f32
    %156 = vector.broadcast %cst_77 : f32 to vector<8x1xf32>
    %157 = arith.addf %1, %156 : vector<8x1xf32>
    %158 = tpu.reciprocal %157 {approx = true} : vector<8x1xf32> -> vector<8x1xf32>
    %159 = vector.broadcast %158 : vector<8x1xf32> to vector<8x8xf32>
    %160 = arith.mulf %155, %159 : vector<8x8xf32>
    %161 = vector.broadcast %153 : vector<8x1xf32> to vector<8x8xf32>
    %162 = arith.mulf %160, %161 : vector<8x8xf32>
    %163 = vector.broadcast %6 : vector<8x1xf32> to vector<8x8xf32>
    %164 = arith.addf %162, %163 : vector<8x8xf32>
    %c0_78 = arith.constant 0 : index
    %c0_79 = arith.constant 0 : index
    %165 = vector.load %arg5[%c0_78, %c0_79] : memref<8x8xf32, #tpu.memory_space<vmem>>, vector<8x8xf32>
    tpu.vector_store %arg5[%c0_78, %c0_79], %164 {strides = array<i32>} : memref<8x8xf32, #tpu.memory_space<vmem>>, vector<8x8xf32>,
    return
  }
}

</mosaic_0001>

<llo_original>
// kernel: forward.1
$region0: #{forward.1}
  #allocation0 [shape = 'u32[]', space=smem, size = 0x4, offset = 0x4, fixed_abs, tag = 'smem constant byte address 0x4 - core index']
  #allocation1 [shape = 'u32[72,128]{1,0:T(1,128)}', space=vmem, size = 0x9000, scoped, tag = 'internal scratch']
  %s0 = inlined_call_operand.hbm [shape: f32[8,16], index: 0, kind: input, shape index: {}]
  %s1 = inlined_call_operand.hbm [shape: f32[32,256], index: 1, kind: input, shape index: {}]
  %s2 = inlined_call_operand.hbm [shape: f32[416,64], index: 2, kind: input, shape index: {}]
  %s3 = inlined_call_operand.hbm [shape: f32[360,32], index: 3, kind: input, shape index: {}]
  %s4 = inlined_call_operand.hbm [shape: f32[112,8], index: 4, kind: input, shape index: {}]
  %s5 = inlined_call_operand.hbm [shape: f32[8,8], index: 5, kind: output, shape index: {}]
  %s6 = sld [smem:[#allocation0]]
  $region50: #{forward.1} parent=0
    _
  %s8 = ssub.s32 1, %s6
  %s9 = scalar_select 0, %s8, %s6
  $region1: #{forward.1} parent=0
    #allocation2 [shape = 'u8[4096]{0}', space=vmem, size = 0x1000, scoped, tag = 'input window, operand 0, single buffered']
    #allocation3 [shape = 's32[1]{0}', space=sflag, size = 0x4, scoped, tag = 'scoped memory for forward.1']
    #allocation4 [shape = 's32[1]{0}', space=sflag, size = 0x4, scoped, tag = 'scoped memory for forward.1']
    #allocation5 [shape = 'u8[32768]{0}', space=vmem, size = 0x8000, scoped, tag = 'input window, operand 1, single buffered']
    #allocation6 [shape = 's32[1]{0}', space=sflag, size = 0x4, scoped, tag = 'scoped memory for forward.1']
    #allocation7 [shape = 'u8[212992]{0}', space=vmem, size = 0x34000, scoped, tag = 'input window, operand 2, single buffered']
    #allocation8 [shape = 'u8[184320]{0}', space=vmem, size = 0x2d000, scoped, tag = 'input window, operand 3, single buffered']
    #allocation9 [shape = 's32[1]{0}', space=sflag, size = 0x4, scoped, tag = 'scoped memory for forward.1']
    #allocation10 [shape = 'u8[57344]{0}', space=vmem, size = 0xe000, scoped, tag = 'input window, operand 4, single buffered']
    #allocation11 [shape = 'u8[4096]{0}', space=vmem, size = 0x1000, scoped, tag = 'output window, operand 0, single buffered']
    %10 = vsyncpa [#allocation3], 0
    %11 = vsyncpa [#allocation6], 0
    %12 = vsyncpa [#allocation9], 0
    %13 = vsyncpa [#allocation4], 0
    // Predicated region
    $region2: #{forward.1} parent=1 // pred_check
      _
    $region3: #{forward.1} parent=1 // pred_check_branch
      %15 = sbr.rel (0) target = $region5
    $region4: #{forward.1} parent=1 // pred_region
      %17 = vsyncadd [#allocation3], 0
      %s19 = sshll.u32 %s0, 4
      %s20 = int_to_ptr.hbm [resolvable:$true] %s19
      %s21 = sshll.u32 [#allocation2], 4
      %s22 = int_to_ptr.vmem [resolvable:$true] %s21
      %24 = dma.hbm_to_vmem [thread:$0]  %s20, 128, %s22, [#allocation3]
    $region5: #{forward.1} parent=1 // pred_fallthru
      _
    // Predicated region
    $region6: #{forward.1} parent=1 // pred_check
      _
    $region7: #{forward.1} parent=1 // pred_check_branch
      %26 = sbr.rel (0) target = $region9
    $region8: #{forward.1} parent=1 // pred_region
      %28 = vsyncadd [#allocation6], 0
      %s29 = sshll.u32 %s1, 4
      %s30 = int_to_ptr.hbm [resolvable:$true] %s29
      %s31 = sshll.u32 [#allocation5], 4
      %s32 = int_to_ptr.vmem [resolvable:$true] %s31
      %37 = dma.hbm_to_vmem [thread:$0]  %s30, 1024, %s32, [#allocation6], 256, 256, 16
    $region9: #{forward.1} parent=1 // pred_fallthru
      _
    // Predicated region
    $region10: #{forward.1} parent=1 // pred_check
      _
    $region11: #{forward.1} parent=1 // pred_check_branch
      %39 = sbr.rel (0) target = $region13
    $region12: #{forward.1} parent=1 // pred_region
      %41 = vsyncadd [#allocation6], 0
      %s42 = sshll.u32 %s2, 4
      %s43 = int_to_ptr.hbm [resolvable:$true] %s42
      %s44 = sshll.u32 [#allocation7], 4
      %s45 = int_to_ptr.vmem [resolvable:$true] %s44
      %50 = dma.hbm_to_vmem [thread:$0]  %s43, 6656, %s45, [#allocation6], 128, 128, 8
    $region13: #{forward.1} parent=1 // pred_fallthru
      _
    // Predicated region
    $region14: #{forward.1} parent=1 // pred_check
      _
    $region15: #{forward.1} parent=1 // pred_check_branch
      %52 = sbr.rel (0) target = $region17
    $region16: #{forward.1} parent=1 // pred_region
      %54 = vsyncadd [#allocation9], 0
      %s55 = sshll.u32 %s3, 4
      %s56 = int_to_ptr.hbm [resolvable:$true] %s55
      %s57 = sshll.u32 [#allocation8], 4
      %s58 = int_to_ptr.vmem [resolvable:$true] %s57
      %63 = dma.hbm_to_vmem [thread:$0]  %s56, 5760, %s58, [#allocation9], 128, 128, 8
    $region17: #{forward.1} parent=1 // pred_fallthru
      _
    // Predicated region
    $region18: #{forward.1} parent=1 // pred_check
      _
    $region19: #{forward.1} parent=1 // pred_check_branch
      %65 = sbr.rel (0) target = $region21
    $region20: #{forward.1} parent=1 // pred_region
      %67 = vsyncadd [#allocation9], 0
      %s68 = sshll.u32 %s4, 4
      %s69 = int_to_ptr.hbm [resolvable:$true] %s68
      %s70 = sshll.u32 [#allocation10], 4
      %s71 = int_to_ptr.vmem [resolvable:$true] %s70
      %76 = dma.hbm_to_vmem [thread:$0]  %s69, 1792, %s71, [#allocation9], 128, 128, 8
    $region21: #{forward.1} parent=1 // pred_fallthru
      _
    // Predicated region
    $region22: #{forward.1} parent=1 // pred_check
      _
    $region23: #{forward.1} parent=1 // pred_check_branch
      %78 = sbr.rel (0) target = $region25
    $region24: #{forward.1} parent=1 // pred_region
      %80 = dma.done [#allocation3], 128
    $region25: #{forward.1} parent=1 // pred_fallthru
      _
    // Predicated region
    $region26: #{forward.1} parent=1 // pred_check
      _
    $region27: #{forward.1} parent=1 // pred_check_branch
      %82 = sbr.rel (0) target = $region29
    $region28: #{forward.1} parent=1 // pred_region
      %84 = dma.done [#allocation6], 1024
    $region29: #{forward.1} parent=1 // pred_fallthru
      _
    // Predicated region
    $region30: #{forward.1} parent=1 // pred_check
      _
    $region31: #{forward.1} parent=1 // pred_check_branch
      %86 = sbr.rel (0) target = $region33
    $region32: #{forward.1} parent=1 // pred_region
      %88 = dma.done [#allocation6], 6656
    $region33: #{forward.1} parent=1 // pred_fallthru
      _
    // Predicated region
    $region34: #{forward.1} parent=1 // pred_check
      _
    $region35: #{forward.1} parent=1 // pred_check_branch
      %90 = sbr.rel (0) target = $region37
    $region36: #{forward.1} parent=1 // pred_region
      %92 = dma.done [#allocation9], 5760
    $region37: #{forward.1} parent=1 // pred_fallthru
      _
    // Predicated region
    $region38: #{forward.1} parent=1 // pred_check
      _
    $region39: #{forward.1} parent=1 // pred_check_branch
      %94 = sbr.rel (0) target = $region41
    $region40: #{forward.1} parent=1 // pred_region
      %96 = dma.done [#allocation9], 1792
    $region41: #{forward.1} parent=1 // pred_fallthru
      _
    %v97 = vld [vmem:[#allocation2] sm:$0xff]
    %v98 = vld [vmem:[#allocation10 + $0x68] sm:$0xff]
    %vm99 = vcmask 130048
    %v100 = vsel %vm99, %v97, 0.0
    %101 = vadd.xlane.f32.xlu0 %v100
    %v102 = vpop.xlane.xlu0 %101
    %v103 = vrcp.pop 16.0
    %v104 = vmul.f32 16.0, %v103
    %v105 = vsub.f32 1.0, %v104
    %v106 = vmul.f32 %v103, %v105
    %v107 = vadd.f32 %v103, %v106
    %vm108 = vweird.f32 %v103
    %v109 = vsel %vm108, %v103, %v107
    %v110 = vmul.f32 %v102, %v109
    %v111 = vsub.f32 %v97, %v110
    %v112 = vmul.f32 %v111, %v111
    %v113 = vsel %vm99, %v112, 0.0
    %114 = vadd.xlane.f32.xlu0 %v113
    %v115 = vpop.xlane.xlu0 %114
    %v116 = vmul.f32 %v115, %v109
    %v117 = vadd.f32 %v116, 1e-05
    %v118 = vrsqrt.pop %v117
    %v119 = vmul.f32 %v118, %v117
    %v120 = vmul.f32 %v119, %v118
    %v121 = vmul.f32 0.5, %v120
    %v122 = vsub.f32 1.5, %v121
    %v123 = vmul.f32 %v118, %v122
    %vm124 = vweird.f32 %v117
    %vm125 = vweird.f32 %v118
    %vm126 = vmor %vm124, %vm125
    %v127 = vsel %vm126, %v118, %v123
    %v128 = vmul.f32 %v111, %v127
    %130 = vset.pattern.permute.xlu0 0
    %131 = vperm.xlu0 %130, %v98
    %v132 = vpop.permute.xlu0 %131
    %v134 = vmul.f32 %v128, %v132
    %135 = vset.pattern.permute.xlu0 1
    %136 = vperm.xlu0 %135, %v98
    %v137 = vpop.permute.xlu0 %136
    %v139 = vadd.f32 %v134, %v137
    %v140 = vld [vmem:[#allocation7] sm:$0xff]
    %v141 = vld [vmem:[#allocation7 + $0x8] sm:$0xff]
    %v142 = vld [vmem:[#allocation7 + $0x10] sm:$0x1]
    %v143 = vperm.slane %v142, 0
    %v145 = vsel %vm99, %v139, 0
    %147 = vmatpush.msra.mxu0 0.0
    %148 = vmatpush.msra.mxu0 0.0
    %149 = vmatpush.msra.mxu0 0.0
    %150 = vmatpush.msra.mxu0 0.0
    %151 = vmatpush.msra.mxu0 0.0
    %152 = vmatpush.msra.mxu0 0.0
    %153 = vmatpush.msra.mxu0 0.0
    %154 = vmatpush.msra.mxu0 0.0
    %155 = vmatpush.msra.mxu0 0.0
    %156 = vmatpush.msra.mxu0 0.0
    %157 = vmatpush.msra.mxu0 0.0
    %158 = vmatpush.msra.mxu0 0.0
    %159 = vmatpush.msra.mxu0 0.0
    %160 = vmatpush.msra.mxu0 0.0
    %161 = vmatpush.msra.mxu0 %v141
    %162 = vmatpush.msra.mxu0 %v140
    %163 = vmatmul.f32.gmra.mxu0 %v145
    %v164 = vpop.f32.mrf.mxu0
    %v165 = vadd.f32 %v143, %v164
    %166 = vdwg.mxu0
    %168 = vrot.lane.b32.xlu0 %v165, 64
    %v169 = vpop.permute.xlu0 %168
    %vm171 = vcmask 523264
    %v172 = vsel %vm171, %v165, %v169
    %v173 = vld [vmem:[#allocation5] sm:$0xff]
    %v174 = vld [vmem:[#allocation5 + $0x8] sm:$0xff]
    %v175 = vmul.f32 %v172, %v173
    %v176 = vmul.f32 %v172, %v174
    %v177 = vld [vmem:[#allocation10] sm:$0xff]
    %vm178 = vcmask 64512
    %v180 = vsel %vm178, %v177, 0
    %182 = vmatpush.msra.mxu0 0.0
    %183 = vmatpush.msra.mxu0 0.0
    %184 = vmatpush.msra.mxu0 0.0
    %185 = vmatpush.msra.mxu0 0.0
    %186 = vmatpush.msra.mxu0 0.0
    %187 = vmatpush.msra.mxu0 0.0
    %188 = vmatpush.msra.mxu0 0.0
    %189 = vmatpush.msra.mxu0 0.0
    %190 = vmatpush.msra.mxu0 0.0
    %191 = vmatpush.msra.mxu0 0.0
    %192 = vmatpush.msra.mxu0 0.0
    %193 = vmatpush.msra.mxu0 0.0
    %194 = vmatpush.msra.mxu0 0.0
    %195 = vmatpush.msra.mxu0 0.0
    %196 = vmatpush.msra.mxu0 0.0
    %197 = vmatpush.msra.mxu0 %v175
    %198 = vmatmul.f32.gmra.mxu0 %v180
    %v199 = vpop.f32.mrf.mxu0
    %v200 = vadd.f32 0.0, %v199
    %201 = vdwg.mxu0
    %202 = vmatpush.msra.mxu0 0.0
    %203 = vmatpush.msra.mxu0 0.0
    %204 = vmatpush.msra.mxu0 0.0
    %205 = vmatpush.msra.mxu0 0.0
    %206 = vmatpush.msra.mxu0 0.0
    %207 = vmatpush.msra.mxu0 0.0
    %208 = vmatpush.msra.mxu0 0.0
    %209 = vmatpush.msra.mxu0 0.0
    %210 = vmatpush.msra.mxu0 0.0
    %211 = vmatpush.msra.mxu0 0.0
    %212 = vmatpush.msra.mxu0 0.0
    %213 = vmatpush.msra.mxu0 0.0
    %214 = vmatpush.msra.mxu0 0.0
    %215 = vmatpush.msra.mxu0 0.0
    %216 = vmatpush.msra.mxu0 0.0
    %217 = vmatpush.msra.mxu0 %v176
    %218 = vmatmul.f32.gmra.mxu0 %v180
    %v219 = vpop.f32.mrf.mxu0
    %v220 = vadd.f32 0.0, %v219
    %221 = vdwg.mxu0
    %v222 = vld [vmem:[#allocation5 + $0x10] sm:$0xff]
    %v223 = vld [vmem:[#allocation5 + $0x18] sm:$0xff]
    %v224 = vmul.f32 %v200, %v222
    %v225 = vmul.f32 %v220, %v223
    %v226 = vld [vmem:[#allocation7 + $0x18] sm:$0xff]
    %v227 = vld [vmem:[#allocation7 + $0x20] sm:$0xff]
    %v228 = vld [vmem:[#allocation7 + $0x28] sm:$0xff]
    %v229 = vld [vmem:[#allocation7 + $0x30] sm:$0xff]
    %v230 = vld [vmem:[#allocation7 + $0x38] sm:$0xff]
    %v231 = vld [vmem:[#allocation7 + $0x40] sm:$0xff]
    %v232 = vld [vmem:[#allocation7 + $0x48] sm:$0xff]
    %v233 = vld [vmem:[#allocation7 + $0x50] sm:$0xff]
    %v234 = vld [vmem:[#allocation7 + $0x58] sm:$0xff]
    %v235 = vld [vmem:[#allocation7 + $0x60] sm:$0xff]
    %v236 = vld [vmem:[#allocation7 + $0x68] sm:$0xff]
    %v237 = vld [vmem:[#allocation7 + $0x70] sm:$0xff]
    %v238 = vld [vmem:[#allocation7 + $0x78] sm:$0xff]
    %v239 = vld [vmem:[#allocation7 + $0x80] sm:$0xff]
    %v240 = vld [vmem:[#allocation7 + $0x88] sm:$0xff]
    %v241 = vld [vmem:[#allocation7 + $0x90] sm:$0xff]
    %v242 = vld [vmem:[#allocation7 + $0x98] sm:$0xff]
    %v243 = vld [vmem:[#allocation7 + $0xa0] sm:$0xff]
    %v244 = vld [vmem:[#allocation7 + $0xa8] sm:$0xff]
    %v245 = vld [vmem:[#allocation7 + $0xb0] sm:$0xff]
    %v246 = vld [vmem:[#allocation7 + $0xb8] sm:$0xff]
    %v247 = vld [vmem:[#allocation7 + $0xc0] sm:$0xff]
    %v248 = vld [vmem:[#allocation7 + $0xc8] sm:$0xff]
    %v249 = vld [vmem:[#allocation7 + $0xd0] sm:$0xff]
    %v250 = vld [vmem:[#allocation7 + $0xd8] sm:$0xff]
    %v251 = vld [vmem:[#allocation7 + $0xe0] sm:$0xff]
    %v252 = vld [vmem:[#allocation7 + $0xe8] sm:$0xff]
    %v253 = vld [vmem:[#allocation7 + $0xf0] sm:$0xff]
    %v254 = vld [vmem:[#allocation7 + $0xf8] sm:$0xff]
    %v255 = vld [vmem:[#allocation7 + $0x100] sm:$0xff]
    %v256 = vld [vmem:[#allocation7 + $0x108] sm:$0xff]
    %v257 = vld [vmem:[#allocation7 + $0x110] sm:$0xff]
    %258 = vmatpush.msra.mxu0 %v241
    %259 = vmatpush.msra.mxu0 %v240
    %260 = vmatpush.msra.mxu0 %v239
    %261 = vmatpush.msra.mxu0 %v238
    %262 = vmatpush.msra.mxu0 %v237
    %263 = vmatpush.msra.mxu0 %v236
    %264 = vmatpush.msra.mxu0 %v235
    %265 = vmatpush.msra.mxu0 %v234
    %266 = vmatpush.msra.mxu0 %v233
    %267 = vmatpush.msra.mxu0 %v232
    %268 = vmatpush.msra.mxu0 %v231
    %269 = vmatpush.msra.mxu0 %v230
    %270 = vmatpush.msra.mxu0 %v229
    %271 = vmatpush.msra.mxu0 %v228
    %272 = vmatpush.msra.mxu0 %v227
    %273 = vmatpush.msra.mxu0 %v226
    %274 = vmatmul.f32.gmra.mxu0 %v224
    %v275 = vpop.f32.mrf.mxu0
    %v276 = vadd.f32 0.0, %v275
    %277 = vdwg.mxu0
    %278 = vmatpush.msra.mxu0 %v257
    %279 = vmatpush.msra.mxu0 %v256
    %280 = vmatpush.msra.mxu0 %v255
    %281 = vmatpush.msra.mxu0 %v254
    %282 = vmatpush.msra.mxu0 %v253
    %283 = vmatpush.msra.mxu0 %v252
    %284 = vmatpush.msra.mxu0 %v251
    %285 = vmatpush.msra.mxu0 %v250
    %286 = vmatpush.msra.mxu0 %v249
    %287 = vmatpush.msra.mxu0 %v248
    %288 = vmatpush.msra.mxu0 %v247
    %289 = vmatpush.msra.mxu0 %v246
    %290 = vmatpush.msra.mxu0 %v245
    %291 = vmatpush.msra.mxu0 %v244
    %292 = vmatpush.msra.mxu0 %v243
    %293 = vmatpush.msra.mxu0 %v242
    %294 = vmatmul.f32.gmra.mxu0 %v225
    %v295 = vpop.f32.mrf.mxu0
    %v296 = vadd.f32 %v276, %v295
    %297 = vdwg.mxu0
    %299 = vrot.lane.b32.xlu0 %v296, 112
    %v300 = vpop.permute.xlu0 %299
    %v302 = vadd.f32 %v296, %v300
    %303 = vrot.lane.b32.xlu0 %v296, 96
    %v304 = vpop.permute.xlu0 %303
    %v306 = vadd.f32 %v302, %v304
    %307 = vrot.lane.b32.xlu0 %v296, 80
    %v308 = vpop.permute.xlu0 %307
    %v310 = vadd.f32 %v306, %v308
    %v311 = vmul.f32 %v310, 0.25
    %v312 = vld [vmem:[#allocation10 + $0x10] sm:$0xff]
    %v314 = vsel %vm99, %v311, 0
    %316 = vmatpush.xpose.msra.mxu0 0.0
    %317 = vmatpush.xpose.msra.mxu0 0.0
    %318 = vmatpush.xpose.msra.mxu0 0.0
    %319 = vmatpush.xpose.msra.mxu0 0.0
    %320 = vmatpush.xpose.msra.mxu0 0.0
    %321 = vmatpush.xpose.msra.mxu0 0.0
    %322 = vmatpush.xpose.msra.mxu0 0.0
    %323 = vmatpush.xpose.msra.mxu0 0.0
    %324 = vmatpush.xpose.msra.mxu0 0.0
    %325 = vmatpush.xpose.msra.mxu0 0.0
    %326 = vmatpush.xpose.msra.mxu0 0.0
    %327 = vmatpush.xpose.msra.mxu0 0.0
    %328 = vmatpush.xpose.msra.mxu0 0.0
    %329 = vmatpush.xpose.msra.mxu0 0.0
    %330 = vmatpush.xpose.msra.mxu0 0.0
    %331 = vmatpush.xpose.msra.mxu0 %v314
    %332 = vmatmul.f32.gmra.mxu0 %v314
    %v333 = vpop.f32.mrf.mxu0
    %v334 = vadd.f32 %v312, %v333
    %335 = vdwg.mxu0
    %v336 = vsel %vm178, %v334, -inf
    %337 = vmax.xlane.f32.xlu0 %v336
    %v338 = vpop.xlane.xlu0 %337
    %vm339 = vcmp.ge.f32.partialorder %v334, %v338
    %v340 = vsel %vm339, -inf, %v334
    %v341 = vsel %vm178, %v340, -inf
    %342 = vmax.xlane.f32.xlu0 %v341
    %v343 = vpop.xlane.xlu0 %342
    %vm344 = vcmp.ge.f32.partialorder %v334, %v343
    %v345 = vsel %vm344, %v334, -1e+09
    %v346 = vsel %vm178, %v345, -inf
    %347 = vmax.xlane.f32.xlu0 %v346
    %v348 = vpop.xlane.xlu0 %347
    %v349 = vsub.f32 %v345, %v348
    %v350 = vmul.f32 %v349, 1.442695
    %v351 = vpow.pop %v350
    %v352 = vsel %vm178, %v351, 0.0
    %353 = vadd.xlane.f32.xlu0 %v352
    %v354 = vpop.xlane.xlu0 %353
    %v355 = vrcp.pop %v354
    %v356 = vmul.f32 %v351, %v355
    %v358 = vsel %vm178, %v356, 0
    %360 = vmatpush.msra.mxu0 0.0
    %361 = vmatpush.msra.mxu0 0.0
    %362 = vmatpush.msra.mxu0 0.0
    %363 = vmatpush.msra.mxu0 0.0
    %364 = vmatpush.msra.mxu0 0.0
    %365 = vmatpush.msra.mxu0 0.0
    %366 = vmatpush.msra.mxu0 0.0
    %367 = vmatpush.msra.mxu0 0.0
    %368 = vmatpush.msra.mxu0 0.0
    %369 = vmatpush.msra.mxu0 0.0
    %370 = vmatpush.msra.mxu0 0.0
    %371 = vmatpush.msra.mxu0 0.0
    %372 = vmatpush.msra.mxu0 0.0
    %373 = vmatpush.msra.mxu0 0.0
    %374 = vmatpush.msra.mxu0 0.0
    %375 = vmatpush.msra.mxu0 %v296
    %376 = vmatmul.f32.gmra.mxu0 %v358
    %v377 = vpop.f32.mrf.mxu0
    %v378 = vadd.f32 0.0, %v377
    %379 = vdwg.mxu0
    %v380 = vld [vmem:[#allocation7 + $0x118] sm:$0xff]
    %v381 = vld [vmem:[#allocation7 + $0x120] sm:$0xff]
    %v382 = vld [vmem:[#allocation7 + $0x128] sm:$0xff]
    %v383 = vld [vmem:[#allocation7 + $0x130] sm:$0xff]
    %v384 = vld [vmem:[#allocation7 + $0x138] sm:$0xff]
    %v385 = vld [vmem:[#allocation7 + $0x140] sm:$0xff]
    %v386 = vld [vmem:[#allocation7 + $0x148] sm:$0xff]
    %v387 = vld [vmem:[#allocation7 + $0x150] sm:$0xff]
    %v388 = vld [vmem:[#allocation7 + $0x198] sm:$0x1]
    %v389 = vperm.slane %v388, 0
    %v391 = vsel %vm171, %v378, 0
    %393 = vmatpush.msra.mxu0 0.0
    %394 = vmatpush.msra.mxu0 0.0
    %395 = vmatpush.msra.mxu0 0.0
    %396 = vmatpush.msra.mxu0 0.0
    %397 = vmatpush.msra.mxu0 0.0
    %398 = vmatpush.msra.mxu0 0.0
    %399 = vmatpush.msra.mxu0 0.0
    %400 = vmatpush.msra.mxu0 0.0
    %401 = vmatpush.msra.mxu0 %v387
    %402 = vmatpush.msra.mxu0 %v386
    %403 = vmatpush.msra.mxu0 %v385
    %404 = vmatpush.msra.mxu0 %v384
    %405 = vmatpush.msra.mxu0 %v383
    %406 = vmatpush.msra.mxu0 %v382
    %407 = vmatpush.msra.mxu0 %v381
    %408 = vmatpush.msra.mxu0 %v380
    %409 = vmatmul.f32.gmra.mxu0 %v391
    %v410 = vpop.f32.mrf.mxu0
    %v411 = vadd.f32 %v389, %v410
    %412 = vdwg.mxu0
    %v413 = vmax.f32 %v411, 0.0
    %414 = vmatpush.msra.mxu0 0.0
    %415 = vmatpush.msra.mxu0 0.0
    %416 = vmatpush.msra.mxu0 0.0
    %417 = vmatpush.msra.mxu0 0.0
    %418 = vmatpush.msra.mxu0 0.0
    %419 = vmatpush.msra.mxu0 0.0
    %420 = vmatpush.msra.mxu0 0.0
    %421 = vmatpush.msra.mxu0 0.0
    %422 = vmatpush.msra.mxu0 0.0
    %423 = vmatpush.msra.mxu0 0.0
    %424 = vmatpush.msra.mxu0 0.0
    %425 = vmatpush.msra.mxu0 0.0
    %426 = vmatpush.msra.mxu0 0.0
    %427 = vmatpush.msra.mxu0 0.0
    %428 = vmatpush.msra.mxu0 0.0
    %429 = vmatpush.msra.mxu0 %v413
    %430 = vmatmul.f32.gmra.mxu0 %v358
    %v431 = vpop.f32.mrf.mxu0
    %v432 = vadd.f32 0.0, %v431
    %433 = vdwg.mxu0
    %v434 = vld [vmem:[#allocation7 + $0x158] sm:$0xff]
    %v435 = vld [vmem:[#allocation7 + $0x160] sm:$0xff]
    %v436 = vld [vmem:[#allocation7 + $0x168] sm:$0xff]
    %v437 = vld [vmem:[#allocation7 + $0x170] sm:$0xff]
    %v438 = vld [vmem:[#allocation7 + $0x178] sm:$0xff]
    %v439 = vld [vmem:[#allocation7 + $0x180] sm:$0xff]
    %v440 = vld [vmem:[#allocation7 + $0x188] sm:$0xff]
    %v441 = vld [vmem:[#allocation7 + $0x190] sm:$0xff]
    %v442 = vld [vmem:[#allocation7 + $0x199] sm:$0x1]
    %v443 = vperm.slane %v442, 0
    %v445 = vsel %vm171, %v432, 0
    %447 = vmatpush.msra.mxu0 0.0
    %448 = vmatpush.msra.mxu0 0.0
    %449 = vmatpush.msra.mxu0 0.0
    %450 = vmatpush.msra.mxu0 0.0
    %451 = vmatpush.msra.mxu0 0.0
    %452 = vmatpush.msra.mxu0 0.0
    %453 = vmatpush.msra.mxu0 0.0
    %454 = vmatpush.msra.mxu0 0.0
    %455 = vmatpush.msra.mxu0 %v441
    %456 = vmatpush.msra.mxu0 %v440
    %457 = vmatpush.msra.mxu0 %v439
    %458 = vmatpush.msra.mxu0 %v438
    %459 = vmatpush.msra.mxu0 %v437
    %460 = vmatpush.msra.mxu0 %v436
    %461 = vmatpush.msra.mxu0 %v435
    %462 = vmatpush.msra.mxu0 %v434
    %463 = vmatmul.f32.gmra.mxu0 %v445
    %v464 = vpop.f32.mrf.mxu0
    %v465 = vadd.f32 %v443, %v464
    %466 = vdwg.mxu0
    %v467 = vmax.f32 %v465, 0.0
    %469 = vrot.lane.b32.xlu0 %v467, 64
    %v470 = vpop.permute.xlu0 %469
    %v472 = vsel %vm171, %v467, %v470
    %v473 = vld [vmem:[#allocation5 + $0x20] sm:$0xff]
    %v474 = vld [vmem:[#allocation5 + $0x28] sm:$0xff]
    %v475 = vmul.f32 %v472, %v473
    %v476 = vmul.f32 %v472, %v474
    %v477 = vld [vmem:[#allocation10 + $0x8] sm:$0xff]
    %v479 = vsel %vm178, %v477, 0
    %481 = vmatpush.msra.mxu0 0.0
    %482 = vmatpush.msra.mxu0 0.0
    %483 = vmatpush.msra.mxu0 0.0
    %484 = vmatpush.msra.mxu0 0.0
    %485 = vmatpush.msra.mxu0 0.0
    %486 = vmatpush.msra.mxu0 0.0
    %487 = vmatpush.msra.mxu0 0.0
    %488 = vmatpush.msra.mxu0 0.0
    %489 = vmatpush.msra.mxu0 0.0
    %490 = vmatpush.msra.mxu0 0.0
    %491 = vmatpush.msra.mxu0 0.0
    %492 = vmatpush.msra.mxu0 0.0
    %493 = vmatpush.msra.mxu0 0.0
    %494 = vmatpush.msra.mxu0 0.0
    %495 = vmatpush.msra.mxu0 0.0
    %496 = vmatpush.msra.mxu0 %v475
    %497 = vmatmul.f32.gmra.mxu0 %v479
    %v498 = vpop.f32.mrf.mxu0
    %v499 = vadd.f32 0.0, %v498
    %500 = vdwg.mxu0
    %501 = vmatpush.msra.mxu0 0.0
    %502 = vmatpush.msra.mxu0 0.0
    %503 = vmatpush.msra.mxu0 0.0
    %504 = vmatpush.msra.mxu0 0.0
    %505 = vmatpush.msra.mxu0 0.0
    %506 = vmatpush.msra.mxu0 0.0
    %507 = vmatpush.msra.mxu0 0.0
    %508 = vmatpush.msra.mxu0 0.0
    %509 = vmatpush.msra.mxu0 0.0
    %510 = vmatpush.msra.mxu0 0.0
    %511 = vmatpush.msra.mxu0 0.0
    %512 = vmatpush.msra.mxu0 0.0
    %513 = vmatpush.msra.mxu0 0.0
    %514 = vmatpush.msra.mxu0 0.0
    %515 = vmatpush.msra.mxu0 0.0
    %516 = vmatpush.msra.mxu0 %v476
    %517 = vmatmul.f32.gmra.mxu0 %v479
    %v518 = vpop.f32.mrf.mxu0
    %v519 = vadd.f32 0.0, %v518
    %520 = vdwg.mxu0
    %v521 = vld [vmem:[#allocation5 + $0x30] sm:$0xff]
    %v522 = vld [vmem:[#allocation5 + $0x38] sm:$0xff]
    %v523 = vmul.f32 %v499, %v521
    %v524 = vmul.f32 %v519, %v522
    %v525 = vld [vmem:[#allocation8] sm:$0xff]
    %v526 = vld [vmem:[#allocation8 + $0x8] sm:$0xff]
    %v527 = vld [vmem:[#allocation8 + $0x10] sm:$0xff]
    %v528 = vld [vmem:[#allocation8 + $0x18] sm:$0xff]
    %v529 = vld [vmem:[#allocation8 + $0x20] sm:$0xff]
    %v530 = vld [vmem:[#allocation8 + $0x28] sm:$0xff]
    %v531 = vld [vmem:[#allocation8 + $0x30] sm:$0xff]
    %v532 = vld [vmem:[#allocation8 + $0x38] sm:$0xff]
    %v533 = vld [vmem:[#allocation8 + $0x40] sm:$0xff]
    %v534 = vld [vmem:[#allocation8 + $0x48] sm:$0xff]
    %v535 = vld [vmem:[#allocation8 + $0x50] sm:$0xff]
    %v536 = vld [vmem:[#allocation8 + $0x58] sm:$0xff]
    %v537 = vld [vmem:[#allocation8 + $0x60] sm:$0xff]
    %v538 = vld [vmem:[#allocation8 + $0x68] sm:$0xff]
    %v539 = vld [vmem:[#allocation8 + $0x70] sm:$0xff]
    %v540 = vld [vmem:[#allocation8 + $0x78] sm:$0xff]
    %v541 = vld [vmem:[#allocation8 + $0x80] sm:$0xff]
    %v542 = vld [vmem:[#allocation8 + $0x88] sm:$0xff]
    %v543 = vld [vmem:[#allocation8 + $0x90] sm:$0xff]
    %v544 = vld [vmem:[#allocation8 + $0x98] sm:$0xff]
    %v545 = vld [vmem:[#allocation8 + $0xa0] sm:$0xff]
    %v546 = vld [vmem:[#allocation8 + $0xa8] sm:$0xff]
    %v547 = vld [vmem:[#allocation8 + $0xb0] sm:$0xff]
    %v548 = vld [vmem:[#allocation8 + $0xb8] sm:$0xff]
    %v549 = vld [vmem:[#allocation8 + $0xc0] sm:$0xff]
    %v550 = vld [vmem:[#allocation8 + $0xc8] sm:$0xff]
    %v551 = vld [vmem:[#allocation8 + $0xd0] sm:$0xff]
    %v552 = vld [vmem:[#allocation8 + $0xd8] sm:$0xff]
    %v553 = vld [vmem:[#allocation8 + $0xe0] sm:$0xff]
    %v554 = vld [vmem:[#allocation8 + $0xe8] sm:$0xff]
    %v555 = vld [vmem:[#allocation8 + $0xf0] sm:$0xff]
    %v556 = vld [vmem:[#allocation8 + $0xf8] sm:$0xff]
    %v557 = vld [vmem:[#allocation8 + $0x100] sm:$0x1]
    %v558 = vperm.slane %v557, 0
    %559 = vmatpush.msra.mxu0 %v540
    %560 = vmatpush.msra.mxu0 %v539
    %561 = vmatpush.msra.mxu0 %v538
    %562 = vmatpush.msra.mxu0 %v537
    %563 = vmatpush.msra.mxu0 %v536
    %564 = vmatpush.msra.mxu0 %v535
    %565 = vmatpush.msra.mxu0 %v534
    %566 = vmatpush.msra.mxu0 %v533
    %567 = vmatpush.msra.mxu0 %v532
    %568 = vmatpush.msra.mxu0 %v531
    %569 = vmatpush.msra.mxu0 %v530
    %570 = vmatpush.msra.mxu0 %v529
    %571 = vmatpush.msra.mxu0 %v528
    %572 = vmatpush.msra.mxu0 %v527
    %573 = vmatpush.msra.mxu0 %v526
    %574 = vmatpush.msra.mxu0 %v525
    %575 = vmatmul.f32.gmra.mxu0 %v523
    %v576 = vpop.f32.mrf.mxu0
    %v577 = vadd.f32 %v558, %v576
    %578 = vdwg.mxu0
    %579 = vmatpush.msra.mxu0 %v556
    %580 = vmatpush.msra.mxu0 %v555
    %581 = vmatpush.msra.mxu0 %v554
    %582 = vmatpush.msra.mxu0 %v553
    %583 = vmatpush.msra.mxu0 %v552
    %584 = vmatpush.msra.mxu0 %v551
    %585 = vmatpush.msra.mxu0 %v550
    %586 = vmatpush.msra.mxu0 %v549
    %587 = vmatpush.msra.mxu0 %v548
    %588 = vmatpush.msra.mxu0 %v547
    %589 = vmatpush.msra.mxu0 %v546
    %590 = vmatpush.msra.mxu0 %v545
    %591 = vmatpush.msra.mxu0 %v544
    %592 = vmatpush.msra.mxu0 %v543
    %593 = vmatpush.msra.mxu0 %v542
    %594 = vmatpush.msra.mxu0 %v541
    %595 = vmatmul.f32.gmra.mxu0 %v524
    %v596 = vpop.f32.mrf.mxu0
    %v597 = vadd.f32 %v577, %v596
    %598 = vdwg.mxu0
    %v599 = vld [vmem:[#allocation8 + $0x108] sm:$0xff]
    %v600 = vld [vmem:[#allocation8 + $0x110] sm:$0xff]
    %v601 = vld [vmem:[#allocation8 + $0x118] sm:$0x1]
    %v602 = vperm.slane %v601, 0
    %603 = vmatpush.msra.mxu0 0.0
    %604 = vmatpush.msra.mxu0 0.0
    %605 = vmatpush.msra.mxu0 0.0
    %606 = vmatpush.msra.mxu0 0.0
    %607 = vmatpush.msra.mxu0 0.0
    %608 = vmatpush.msra.mxu0 0.0
    %609 = vmatpush.msra.mxu0 0.0
    %610 = vmatpush.msra.mxu0 0.0
    %611 = vmatpush.msra.mxu0 0.0
    %612 = vmatpush.msra.mxu0 0.0
    %613 = vmatpush.msra.mxu0 0.0
    %614 = vmatpush.msra.mxu0 0.0
    %615 = vmatpush.msra.mxu0 0.0
    %616 = vmatpush.msra.mxu0 0.0
    %617 = vmatpush.msra.mxu0 %v600
    %618 = vmatpush.msra.mxu0 %v599
    %619 = vmatmul.f32.gmra.mxu0 %v145
    %v620 = vpop.f32.mrf.mxu0
    %v621 = vadd.f32 %v602, %v620
    %622 = vdwg.mxu0
    %v623 = vld [vmem:[#allocation10 + $0x18] sm:$0xff]
    %vm624 = vcmask 261120
    %v626 = vsel %vm624, %v621, 0
    %628 = vmatpush.xpose.msra.mxu0 0.0
    %629 = vmatpush.xpose.msra.mxu0 0.0
    %630 = vmatpush.xpose.msra.mxu0 0.0
    %631 = vmatpush.xpose.msra.mxu0 0.0
    %632 = vmatpush.xpose.msra.mxu0 0.0
    %633 = vmatpush.xpose.msra.mxu0 0.0
    %634 = vmatpush.xpose.msra.mxu0 0.0
    %635 = vmatpush.xpose.msra.mxu0 0.0
    %636 = vmatpush.xpose.msra.mxu0 0.0
    %637 = vmatpush.xpose.msra.mxu0 0.0
    %638 = vmatpush.xpose.msra.mxu0 0.0
    %639 = vmatpush.xpose.msra.mxu0 0.0
    %640 = vmatpush.xpose.msra.mxu0 0.0
    %641 = vmatpush.xpose.msra.mxu0 0.0
    %642 = vmatpush.xpose.msra.mxu0 0.0
    %643 = vmatpush.xpose.msra.mxu0 %v626
    %644 = vmatmul.f32.gmra.mxu0 %v626
    %v645 = vpop.f32.mrf.mxu0
    %v646 = vadd.f32 %v623, %v645
    %647 = vdwg.mxu0
    %v648 = vsel %vm178, %v646, -inf
    %649 = vmax.xlane.f32.xlu0 %v648
    %v650 = vpop.xlane.xlu0 %649
    %vm651 = vcmp.ge.f32.partialorder %v646, %v650
    %v652 = vsel %vm651, -inf, %v646
    %v653 = vsel %vm178, %v652, -inf
    %654 = vmax.xlane.f32.xlu0 %v653
    %v655 = vpop.xlane.xlu0 %654
    %vm656 = vcmp.ge.f32.partialorder %v646, %v655
    %v657 = vsel %vm656, %v646, -1e+09
    %v658 = vsel %vm178, %v657, -inf
    %659 = vmax.xlane.f32.xlu0 %v658
    %v660 = vpop.xlane.xlu0 %659
    %v661 = vsub.f32 %v657, %v660
    %v662 = vmul.f32 %v661, 1.442695
    %v663 = vpow.pop %v662
    %v664 = vsel %vm178, %v663, 0.0
    %665 = vadd.xlane.f32.xlu0 %v664
    %v666 = vpop.xlane.xlu0 %665
    %v667 = vrcp.pop %v666
    %v668 = vmul.f32 %v663, %v667
    %v670 = vsel %vm178, %v668, 0
    %672 = vmatpush.msra.mxu0 0.0
    %673 = vmatpush.msra.mxu0 0.0
    %674 = vmatpush.msra.mxu0 0.0
    %675 = vmatpush.msra.mxu0 0.0
    %676 = vmatpush.msra.mxu0 0.0
    %677 = vmatpush.msra.mxu0 0.0
    %678 = vmatpush.msra.mxu0 0.0
    %679 = vmatpush.msra.mxu0 0.0
    %680 = vmatpush.msra.mxu0 0.0
    %681 = vmatpush.msra.mxu0 0.0
    %682 = vmatpush.msra.mxu0 0.0
    %683 = vmatpush.msra.mxu0 0.0
    %684 = vmatpush.msra.mxu0 0.0
    %685 = vmatpush.msra.mxu0 0.0
    %686 = vmatpush.msra.mxu0 0.0
    %687 = vmatpush.msra.mxu0 %v621
    %688 = vmatmul.f32.gmra.mxu0 %v670
    %v689 = vpop.f32.mrf.mxu0
    %v690 = vadd.f32 0.0, %v689
    %691 = vdwg.mxu0
    %v692 = vld [vmem:[#allocation8 + $0x120] sm:$0xff]
    %v693 = vld [vmem:[#allocation8 + $0x128] sm:$0xff]
    %v694 = vld [vmem:[#allocation8 + $0x130] sm:$0xff]
    %v695 = vld [vmem:[#allocation8 + $0x138] sm:$0xff]
    %v696 = vld [vmem:[#allocation8 + $0x160] sm:$0x1]
    %v697 = vperm.slane %v696, 0
    %v699 = vsel %vm624, %v690, 0
    %701 = vmatpush.msra.mxu0 0.0
    %702 = vmatpush.msra.mxu0 0.0
    %703 = vmatpush.msra.mxu0 0.0
    %704 = vmatpush.msra.mxu0 0.0
    %705 = vmatpush.msra.mxu0 0.0
    %706 = vmatpush.msra.mxu0 0.0
    %707 = vmatpush.msra.mxu0 0.0
    %708 = vmatpush.msra.mxu0 0.0
    %709 = vmatpush.msra.mxu0 0.0
    %710 = vmatpush.msra.mxu0 0.0
    %711 = vmatpush.msra.mxu0 0.0
    %712 = vmatpush.msra.mxu0 0.0
    %713 = vmatpush.msra.mxu0 %v695
    %714 = vmatpush.msra.mxu0 %v694
    %715 = vmatpush.msra.mxu0 %v693
    %716 = vmatpush.msra.mxu0 %v692
    %717 = vmatmul.f32.gmra.mxu0 %v699
    %v718 = vpop.f32.mrf.mxu0
    %v719 = vadd.f32 %v697, %v718
    %720 = vdwg.mxu0
    %v721 = vmax.f32 %v719, 0.0
    %722 = vmatpush.msra.mxu0 0.0
    %723 = vmatpush.msra.mxu0 0.0
    %724 = vmatpush.msra.mxu0 0.0
    %725 = vmatpush.msra.mxu0 0.0
    %726 = vmatpush.msra.mxu0 0.0
    %727 = vmatpush.msra.mxu0 0.0
    %728 = vmatpush.msra.mxu0 0.0
    %729 = vmatpush.msra.mxu0 0.0
    %730 = vmatpush.msra.mxu0 0.0
    %731 = vmatpush.msra.mxu0 0.0
    %732 = vmatpush.msra.mxu0 0.0
    %733 = vmatpush.msra.mxu0 0.0
    %734 = vmatpush.msra.mxu0 0.0
    %735 = vmatpush.msra.mxu0 0.0
    %736 = vmatpush.msra.mxu0 0.0
    %737 = vmatpush.msra.mxu0 %v721
    %738 = vmatmul.f32.gmra.mxu0 %v670
    %v739 = vpop.f32.mrf.mxu0
    %v740 = vadd.f32 0.0, %v739
    %741 = vdwg.mxu0
    %v742 = vld [vmem:[#allocation8 + $0x140] sm:$0xff]
    %v743 = vld [vmem:[#allocation8 + $0x148] sm:$0xff]
    %v744 = vld [vmem:[#allocation8 + $0x150] sm:$0xff]
    %v745 = vld [vmem:[#allocation8 + $0x158] sm:$0xff]
    %v746 = vld [vmem:[#allocation8 + $0x161] sm:$0x1]
    %v747 = vperm.slane %v746, 0
    %v749 = vsel %vm624, %v740, 0
    %751 = vmatpush.msra.mxu0 0.0
    %752 = vmatpush.msra.mxu0 0.0
    %753 = vmatpush.msra.mxu0 0.0
    %754 = vmatpush.msra.mxu0 0.0
    %755 = vmatpush.msra.mxu0 0.0
    %756 = vmatpush.msra.mxu0 0.0
    %757 = vmatpush.msra.mxu0 0.0
    %758 = vmatpush.msra.mxu0 0.0
    %759 = vmatpush.msra.mxu0 0.0
    %760 = vmatpush.msra.mxu0 0.0
    %761 = vmatpush.msra.mxu0 0.0
    %762 = vmatpush.msra.mxu0 0.0
    %763 = vmatpush.msra.mxu0 %v745
    %764 = vmatpush.msra.mxu0 %v744
    %765 = vmatpush.msra.mxu0 %v743
    %766 = vmatpush.msra.mxu0 %v742
    %767 = vmatmul.f32.gmra.mxu0 %v749
    %v768 = vpop.f32.mrf.mxu0
    %v769 = vadd.f32 %v747, %v768
    %770 = vdwg.mxu0
    %v771 = vmax.f32 %v769, 0.0
    %773 = vrot.lane.b32.xlu0 %v771, 32
    %v774 = vpop.permute.xlu0 %773
    %v776 = vsel %vm624, %v597, %v774
    %v777 = vld [vmem:[#allocation10 + $0x20] sm:$0xff]
    %v778 = vld [vmem:[#allocation10 + $0x28] sm:$0xff]
    %v779 = vld [vmem:[#allocation10 + $0x30] sm:$0xff]
    %v780 = vld [vmem:[#allocation10 + $0x38] sm:$0xff]
    %v781 = vld [vmem:[#allocation10 + $0x40] sm:$0xff]
    %v782 = vld [vmem:[#allocation10 + $0x48] sm:$0xff]
    %v783 = vld [vmem:[#allocation10 + $0x50] sm:$0xff]
    %v784 = vld [vmem:[#allocation10 + $0x58] sm:$0xff]
    %v785 = vld [vmem:[#allocation10 + $0x60] sm:$0x1]
    %v786 = vperm.slane %v785, 0
    %v788 = vsel %vm171, %v776, 0
    %790 = vmatpush.msra.mxu0 0.0
    %791 = vmatpush.msra.mxu0 0.0
    %792 = vmatpush.msra.mxu0 0.0
    %793 = vmatpush.msra.mxu0 0.0
    %794 = vmatpush.msra.mxu0 0.0
    %795 = vmatpush.msra.mxu0 0.0
    %796 = vmatpush.msra.mxu0 0.0
    %797 = vmatpush.msra.mxu0 0.0
    %798 = vmatpush.msra.mxu0 %v784
    %799 = vmatpush.msra.mxu0 %v783
    %800 = vmatpush.msra.mxu0 %v782
    %801 = vmatpush.msra.mxu0 %v781
    %802 = vmatpush.msra.mxu0 %v780
    %803 = vmatpush.msra.mxu0 %v779
    %804 = vmatpush.msra.mxu0 %v778
    %805 = vmatpush.msra.mxu0 %v777
    %806 = vmatmul.f32.gmra.mxu0 %v788
    %v807 = vpop.f32.mrf.mxu0
    %v808 = vadd.f32 %v786, %v807
    %809 = vdwg.mxu0
    %v810 = vmul.f32 %v117, %v127
    %v811 = vsub.f32 %v808, %v137
    %v812 = vadd.f32 %v98, 1e-10
    %v813 = vrcp.pop %v812
    %815 = vset.pattern.permute.xlu0 0
    %816 = vperm.xlu0 %815, %v813
    %v817 = vpop.permute.xlu0 %816
    %v819 = vmul.f32 %v811, %v817
    %v820 = vmul.f32 %v819, %v810
    %v821 = vadd.f32 %v820, %v110
    %822 = vst.msk [vmem:[#allocation11] sm:$0xff] %vm178, %v821
    // Predicated region
    $region42: #{forward.1} parent=1 // pred_check
      _
    $region43: #{forward.1} parent=1 // pred_check_branch
      %824 = sbr.rel (0) target = $region45
    $region44: #{forward.1} parent=1 // pred_region
      %826 = vsyncadd [#allocation4], 0
      %s828 = sshll.u32 [#allocation11], 4
      %s829 = int_to_ptr.vmem [resolvable:$true] %s828
      %s830 = sshll.u32 %s5, 4
      %s831 = int_to_ptr.hbm [resolvable:$true] %s830
      %833 = dma.vmem_to_hbm [thread:$0]  %s829, 128, %s831, [#allocation4]
    $region45: #{forward.1} parent=1 // pred_fallthru
      _
    // Predicated region
    $region46: #{forward.1} parent=1 // pred_check
      _
    $region47: #{forward.1} parent=1 // pred_check_branch
      %835 = sbr.rel (0) target = $region49
    $region48: #{forward.1} parent=1 // pred_region
      %837 = dma.done [#allocation4], 128
    $region49: #{forward.1} parent=1 // pred_fallthru
      _
    %838 = vsyncpa [#allocation3], 1
    %839 = vsyncpa [#allocation6], 1
    %840 = vsyncpa [#allocation9], 1
    %841 = vsyncpa [#allocation4], 1

</llo_original>
